<compile_context>
chip_gen: v6e
topology: v6e:2x2x1
jax: 0.10.0
libtpu: 0.0.40
codegen_flags: <defaults>
</compile_context>

<pallas_src>
import jax
import jax.numpy as jnp
from jax.experimental import pallas as pl
from jax.experimental.pallas import tpu as pltpu

EPS = 1e-5
NEG_SLOPE = 0.01                      # nn.LeakyReLU default
_VMEM_LIMIT = 32 * 1024 * 1024        # > v5e's 16 MiB scoped default, safe on v7x


def _round_up(a, m):
    return ((a + m - 1) // m) * m


def _leaky_relu(x):
    return jnp.where(x > 0, x, NEG_SLOPE * x)


# --------------------------------------------------------------------------- #
# Fused single-block path (whole problem VMEM resident).
# --------------------------------------------------------------------------- #
def _fused_kernel(x_ref, w_ref, b_ref, g_ref, be_ref, o_ref):
    # Conv1d(k=1) == one (N, C_in) x (C_in, C_out) MXU matmul.
    # TODO(synk): on v6e/v7x at production sizes, feed bf16 operands to the dot
    # (keeping f32 accumulation) to cut MXU pass count; kept f32 here to match
    # the f32 PyTorch module within tolerance.
    y = (jnp.dot(x_ref[...], w_ref[...], preferred_element_type=jnp.float32)
         + b_ref[...])
    mean = jnp.mean(y, axis=0, keepdims=True)
    d = y - mean
    var = jnp.mean(d * d, axis=0, keepdims=True)
    scale = g_ref[...] * jax.lax.rsqrt(var + EPS)
    h = d * scale + be_ref[...]
    o_ref[...] = _leaky_relu(h).astype(o_ref.dtype)


def _forward_fused(x2d, w, b, g, be):
    n, c_in = x2d.shape
    c_out = w.shape[1]
    vmem = pl.BlockSpec(memory_space=pltpu.MemorySpace.VMEM)
    return pl.pallas_call(
        _fused_kernel,
        out_shape=jax.ShapeDtypeStruct((n, c_out), jnp.float32),
        in_specs=[vmem] * 5,
        out_specs=vmem,
        compiler_params=pltpu.CompilerParams(vmem_limit_bytes=_VMEM_LIMIT),
        cost_estimate=pl.CostEstimate(
            flops=2 * n * c_in * c_out + 10 * n * c_out,
            transcendentals=c_out,
            bytes_accessed=4 * (n * c_in + c_in * c_out + 3 * c_out + n * c_out),
        ),
    )(x2d, w, b, g, be)


# --------------------------------------------------------------------------- #
# Tiled two-pass path (row-streamed; exact full-batch BatchNorm statistics).
# --------------------------------------------------------------------------- #
def _forward_tiled(x2d, w, b, g, be, tile_n):
    n, c_in = x2d.shape
    c_out = w.shape[1]
    tile = _round_up(min(tile_n, n), 8)          # sublane multiple
    n_pad = _round_up(n, tile)
    if n_pad != n:
        x2d = jnp.pad(x2d, ((0, n_pad - n), (0, 0)))
    num_tiles = n_pad // tile

    # ---- pass A: pointwise conv (matmul) + per-channel sum / sum-of-squares --
    def conv_stats_kernel(x_ref, w_ref, b_ref, y_ref, sum_ref, sq_ref):
        t = pl.program_id(0)

        @pl.when(t == 0)
        def _init():
            sum_ref[...] = jnp.zeros_like(sum_ref)
            sq_ref[...] = jnp.zeros_like(sq_ref)

        y = (jnp.dot(x_ref[...], w_ref[...], preferred_element_type=jnp.float32)
             + b_ref[...])
        y_ref[...] = y
        # Mask host-side pad rows out of the BatchNorm statistics so mean/var
        # are computed over the true batch*length only.
        rows = t * tile + jax.lax.broadcasted_iota(jnp.int32, (tile, 1), 0)
        m = (rows < n).astype(jnp.float32)
        ym = y * m
        sum_ref[...] += jnp.sum(ym, axis=0, keepdims=True)
        sq_ref[...] += jnp.sum(ym * y, axis=0, keepdims=True)

    y2d, ssum, ssq = pl.pallas_call(
        conv_stats_kernel,
        grid=(num_tiles,),
        in_specs=[
            pl.BlockSpec((tile, c_in), lambda t: (t, 0)),
            pl.BlockSpec((c_in, c_out), lambda t: (0, 0)),   # weights resident
            pl.BlockSpec((1, c_out), lambda t: (0, 0)),
        ],
        out_specs=[
            pl.BlockSpec((tile, c_out), lambda t: (t, 0)),
            pl.BlockSpec((1, c_out), lambda t: (0, 0)),      # stat accumulator
            pl.BlockSpec((1, c_out), lambda t: (0, 0)),      # stat accumulator
        ],
        out_shape=[
            jax.ShapeDtypeStruct((n_pad, c_out), jnp.float32),
            jax.ShapeDtypeStruct((1, c_out), jnp.float32),
            jax.ShapeDtypeStruct((1, c_out), jnp.float32),
        ],
        compiler_params=pltpu.CompilerParams(
            dimension_semantics=("arbitrary",),   # sequential stat accumulation
            vmem_limit_bytes=_VMEM_LIMIT,
        ),
        cost_estimate=pl.CostEstimate(
            flops=2 * n_pad * c_in * c_out + 6 * n_pad * c_out,
            transcendentals=0,
            bytes_accessed=4 * (n_pad * c_in + c_in * c_out + c_out
                                + n_pad * c_out + 2 * c_out),
        ),
    )(x2d, w, b)

    # ---- pass B: BatchNorm (full-batch stats) + LeakyReLU, tile-parallel -----
    def bn_act_kernel(y_ref, sum_ref, sq_ref, g_ref, be_ref, o_ref):
        inv_n = jnp.float32(1.0 / n)
        mean = sum_ref[...] * inv_n
        var = jnp.maximum(sq_ref[...] * inv_n - mean * mean, 0.0)
        scale = g_ref[...] * jax.lax.rsqrt(var + EPS)
        shift = be_ref[...] - mean * scale
        o_ref[...] = _leaky_relu(y_ref[...] * scale + shift).astype(o_ref.dtype)

    out2d = pl.pallas_call(
        bn_act_kernel,
        grid=(num_tiles,),
        in_specs=[
            pl.BlockSpec((tile, c_out), lambda t: (t, 0)),
            pl.BlockSpec((1, c_out), lambda t: (0, 0)),
            pl.BlockSpec((1, c_out), lambda t: (0, 0)),
            pl.BlockSpec((1, c_out), lambda t: (0, 0)),
            pl.BlockSpec((1, c_out), lambda t: (0, 0)),
        ],
        out_specs=pl.BlockSpec((tile, c_out), lambda t: (t, 0)),
        out_shape=jax.ShapeDtypeStruct((n_pad, c_out), jnp.float32),
        compiler_params=pltpu.CompilerParams(
            dimension_semantics=("parallel",),    # megacore-shardable
            vmem_limit_bytes=_VMEM_LIMIT,
        ),
        cost_estimate=pl.CostEstimate(
            flops=8 * n_pad * c_out,
            transcendentals=c_out,
            bytes_accessed=4 * (2 * n_pad * c_out + 4 * c_out),
        ),
    )(y2d, ssum, ssq, g, be)

    return out2d[:n]


# --------------------------------------------------------------------------- #
# Wrapper
# --------------------------------------------------------------------------- #
def bottleneck_forward(x, params, *, tile_n=512, fused_vmem_budget=8 << 20):
    """x: (B, C_in, L) -> (B, C_out, L), matching BottleneckLayer.forward."""
    batch, c_in, length = x.shape
    w, b, g, be = params["w"], params["b"], params["g"], params["be"]
    c_out = w.shape[1]
    n = batch * length

    # Channels on the lane axis, batch*length on sublanes: Conv1d(k=1) becomes
    # one (N, C_in) x (C_in, C_out) matmul shared across all positions.
    x2d = jnp.transpose(x, (0, 2, 1)).reshape(n, c_in)

    resident_bytes = 4 * n * (c_in + 2 * c_out)   # x + conv-out + result
    if resident_bytes <= fused_vmem_budget:
        out2d = _forward_fused(x2d, w, b, g, be)
    else:
        out2d = _forward_tiled(x2d, w, b, g, be, tile_n)

    return jnp.transpose(out2d.reshape(batch, length, c_out), (0, 2, 1))


def init_params(key, c_in, c_out):
    # Matches nn.Conv1d(c_in, c_out, 1) default init; weight stored
    # pre-transposed as (C_in, C_out) so the kernel consumes it directly.
    kw, kb = jax.random.split(key)
    bound = 1.0 / (c_in ** 0.5)
    w = jax.random.uniform(kw, (c_in, c_out), jnp.float32, -bound, bound)
    b = jax.random.uniform(kb, (1, c_out), jnp.float32, -bound, bound)
    return {
        "w": w,
        "b": b,
        "g": jnp.ones((1, c_out), jnp.float32),    # BatchNorm gamma
        "be": jnp.zeros((1, c_out), jnp.float32),  # BatchNorm beta
    }


def reference_forward(x, params):
    # Pure-JAX reference mirroring the PyTorch forward (training-mode BN).
    w, b, g, be = params["w"], params["b"], params["g"], params["be"]
    y = jnp.einsum("bcl,co->bol", x, w) + b.reshape(1, -1, 1)
    mean = jnp.mean(y, axis=(0, 2), keepdims=True)
    var = jnp.mean((y - mean) ** 2, axis=(0, 2), keepdims=True)
    h = ((y - mean) * jax.lax.rsqrt(var + EPS) * g.reshape(1, -1, 1)
         + be.reshape(1, -1, 1))
    return _leaky_relu(h)


if __name__ == "__main__":
    B, C_IN, C_OUT, L = 3, 16, 32, 50            # small, module-consistent shapes

    key = jax.random.PRNGKey(0)
    kx, kp = jax.random.split(key)
    x = jax.random.normal(kx, (B, C_IN, L), jnp.float32)
    params = init_params(kp, C_IN, C_OUT)

    # Auto path (fused single-block kernel at this size).
    out = jax.block_until_ready(bottleneck_forward(x, params))
    # Force the tiled two-pass path (3 row tiles of 64, pad rows masked).
    out_tiled = jax.block_until_ready(
        bottleneck_forward(x, params, tile_n=64, fused_vmem_budget=0))

    ref = reference_forward(x, params)
    assert out.shape == (B, C_OUT, L)
    assert out_tiled.shape == (B, C_OUT, L)
    assert jnp.allclose(out, ref, atol=1e-4, rtol=1e-4), "fused path mismatch"
    assert jnp.allclose(out_tiled, ref, atol=1e-4, rtol=1e-4), "tiled path mismatch"
    print("KERNEL_OK")
</pallas_src>

<mosaic_0001>
module attributes {stable_mosaic.version = 11 : i64} {
  func.func @_fused_kernel(%arg0: memref<150x16xf32, #tpu.memory_space<vmem>>, %arg1: memref<16x32xf32, #tpu.memory_space<vmem>>, %arg2: memref<1x32xf32, #tpu.memory_space<vmem>>, %arg3: memref<1x32xf32, #tpu.memory_space<vmem>>, %arg4: memref<1x32xf32, #tpu.memory_space<vmem>>, %arg5: memref<150x32xf32, #tpu.memory_space<vmem>>) attributes {dimension_semantics = [], scalar_prefetch = 0 : i64, scratch_operands = 0 : i64, tpu.core_type = #tpu.core_type<tc>} {
    %c0 = arith.constant 0 : index
    %c0_0 = arith.constant 0 : index
    %0 = vector.load %arg0[%c0, %c0_0] : memref<150x16xf32, #tpu.memory_space<vmem>>, vector<150x16xf32>
    %c0_1 = arith.constant 0 : index
    %c0_2 = arith.constant 0 : index
    %1 = vector.load %arg1[%c0_1, %c0_2] : memref<16x32xf32, #tpu.memory_space<vmem>>, vector<16x32xf32>
    %cst = arith.constant dense<0.000000e+00> : vector<150x32xf32>
    %2 = tpu.matmul %0, %1, %cst {dimension_numbers = #tpu.dot_dimension_numbers<[1], [0], [0], [1], [0, 0, 1, 1], [], []>} : vector<150x16xf32>, vector<16x32xf32>, vector<150x32xf32> -> vector<150x32xf32>
    %c0_3 = arith.constant 0 : index
    %c0_4 = arith.constant 0 : index
    %3 = vector.load %arg2[%c0_3, %c0_4] : memref<1x32xf32, #tpu.memory_space<vmem>>, vector<1x32xf32>
    %4 = vector.broadcast %3 : vector<1x32xf32> to vector<150x32xf32>
    %5 = arith.addf %2, %4 : vector<150x32xf32>
    %cst_5 = arith.constant dense<0.000000e+00> : vector<32xf32>
    %6 = vector.multi_reduction <add>, %5, %cst_5 [0] : vector<150x32xf32> to vector<32xf32>
    %7 = vector.shape_cast %6 : vector<32xf32> to vector<1x32xf32>
    %cst_6 = arith.constant 1.500000e+02 : f32
    %8 = vector.broadcast %cst_6 : f32 to vector<1x32xf32>
    %9 = arith.divf %7, %8 : vector<1x32xf32>
    %10 = vector.broadcast %9 : vector<1x32xf32> to vector<150x32xf32>
    %11 = arith.subf %5, %10 : vector<150x32xf32>
    %12 = arith.mulf %11, %11 : vector<150x32xf32>
    %cst_7 = arith.constant dense<0.000000e+00> : vector<32xf32>
    %13 = vector.multi_reduction <add>, %12, %cst_7 [0] : vector<150x32xf32> to vector<32xf32>
    %14 = vector.shape_cast %13 : vector<32xf32> to vector<1x32xf32>
    %cst_8 = arith.constant 1.500000e+02 : f32
    %15 = vector.broadcast %cst_8 : f32 to vector<1x32xf32>
    %16 = arith.divf %14, %15 : vector<1x32xf32>
    %c0_9 = arith.constant 0 : index
    %c0_10 = arith.constant 0 : index
    %17 = vector.load %arg3[%c0_9, %c0_10] : memref<1x32xf32, #tpu.memory_space<vmem>>, vector<1x32xf32>
    %cst_11 = arith.constant 9.99999974E-6 : f32
    %18 = vector.broadcast %cst_11 : f32 to vector<1x32xf32>
    %19 = arith.addf %16, %18 : vector<1x32xf32>
    %20 = math.rsqrt %19 : vector<1x32xf32>
    %21 = arith.mulf %17, %20 : vector<1x32xf32>
    %22 = vector.broadcast %21 : vector<1x32xf32> to vector<150x32xf32>
    %23 = arith.mulf %11, %22 : vector<150x32xf32>
    %c0_12 = arith.constant 0 : index
    %c0_13 = arith.constant 0 : index
    %24 = vector.load %arg4[%c0_12, %c0_13] : memref<1x32xf32, #tpu.memory_space<vmem>>, vector<1x32xf32>
    %25 = vector.broadcast %24 : vector<1x32xf32> to vector<150x32xf32>
    %26 = arith.addf %23, %25 : vector<150x32xf32>
    %cst_14 = arith.constant 0.000000e+00 : f32
    %27 = vector.broadcast %cst_14 : f32 to vector<150x32xf32>
    %28 = arith.cmpf ogt, %26, %27 : vector<150x32xf32>
    %cst_15 = arith.constant 0.00999999977 : f32
    %29 = vector.broadcast %cst_15 : f32 to vector<150x32xf32>
    %30 = arith.mulf %29, %26 : vector<150x32xf32>
    %31 = arith.select %28, %26, %30 : vector<150x32xi1>, vector<150x32xf32>
    %c0_16 = arith.constant 0 : index
    %c0_17 = arith.constant 0 : index
    %32 = vector.load %arg5[%c0_16, %c0_17] : memref<150x32xf32, #tpu.memory_space<vmem>>, vector<150x32xf32>
    tpu.vector_store %arg5[%c0_16, %c0_17], %31 {strides = array<i32>} : memref<150x32xf32, #tpu.memory_space<vmem>>, vector<150x32xf32>,
    return
  }
}

</mosaic_0001>

<llo_original>
// kernel: tpu_custom_call.1
$region0: #{tpu_custom_call.1}
  #allocation0 [shape = 'u32[]', space=smem, size = 0x4, offset = 0x4, fixed_abs, tag = 'smem constant byte address 0x4 - core index']
  #allocation1 [shape = 'u32[144,128]{1,0:T(1,128)}', space=vmem, size = 0x12000, scoped, tag = 'internal scratch']
  %s0 = inlined_call_operand.vmem [shape: f32[150,16], index: 0, kind: input, shape index: {}]
  %s1 = inlined_call_operand.vmem [shape: f32[16,32], index: 1, kind: input, shape index: {}]
  %s2 = inlined_call_operand.vmem [shape: f32[1,32], index: 2, kind: input, shape index: {}]
  %s3 = inlined_call_operand.vmem [shape: f32[1,32], index: 3, kind: input, shape index: {}]
  %s4 = inlined_call_operand.vmem [shape: f32[1,32], index: 4, kind: input, shape index: {}]
  %s5 = inlined_call_operand.vmem [shape: f32[150,32], index: 5, kind: output, shape index: {}]
  %s6 = sld [smem:[#allocation0]]
  $region30: #{tpu_custom_call.1} parent=0
    _
  %s8 = ssub.s32 1, %s6
  %s9 = scalar_select 0, %s8, %s6
  // Predicated region
  $region2: #{tpu_custom_call.1} parent=0 // pred_check
    _
  $region3: #{tpu_custom_call.1} parent=0 // pred_check_branch
    %11 = sbr.rel (0) target = $region5
  $region4: #{tpu_custom_call.1} parent=0 // pred_region
    _
  $region5: #{tpu_custom_call.1} parent=0 // pred_fallthru
    _
  // Predicated region
  $region6: #{tpu_custom_call.1} parent=0 // pred_check
    _
  $region7: #{tpu_custom_call.1} parent=0 // pred_check_branch
    %13 = sbr.rel (0) target = $region9
  $region8: #{tpu_custom_call.1} parent=0 // pred_region
    _
  $region9: #{tpu_custom_call.1} parent=0 // pred_fallthru
    _
  // Predicated region
  $region10: #{tpu_custom_call.1} parent=0 // pred_check
    _
  $region11: #{tpu_custom_call.1} parent=0 // pred_check_branch
    %15 = sbr.rel (0) target = $region13
  $region12: #{tpu_custom_call.1} parent=0 // pred_region
    _
  $region13: #{tpu_custom_call.1} parent=0 // pred_fallthru
    _
  // Predicated region
  $region14: #{tpu_custom_call.1} parent=0 // pred_check
    _
  $region15: #{tpu_custom_call.1} parent=0 // pred_check_branch
    %17 = sbr.rel (0) target = $region17
  $region16: #{tpu_custom_call.1} parent=0 // pred_region
    _
  $region17: #{tpu_custom_call.1} parent=0 // pred_fallthru
    _
  // Predicated region
  $region18: #{tpu_custom_call.1} parent=0 // pred_check
    _
  $region19: #{tpu_custom_call.1} parent=0 // pred_check_branch
    %19 = sbr.rel (0) target = $region21
  $region20: #{tpu_custom_call.1} parent=0 // pred_region
    _
  $region21: #{tpu_custom_call.1} parent=0 // pred_fallthru
    _
  %v20 = vld [vmem:[%s0] sm:$0xff]
  %v21 = vld [vmem:[%s0 + $0x8] sm:$0xff]
  %v22 = vld [vmem:[%s0 + $0x10] sm:$0xff]
  %v23 = vld [vmem:[%s0 + $0x18] sm:$0xff]
  %v24 = vld [vmem:[%s0 + $0x20] sm:$0xff]
  %v25 = vld [vmem:[%s0 + $0x28] sm:$0xff]
  %v26 = vld [vmem:[%s0 + $0x30] sm:$0xff]
  %v27 = vld [vmem:[%s0 + $0x38] sm:$0xff]
  %v28 = vld [vmem:[%s0 + $0x40] sm:$0xff]
  %v29 = vld [vmem:[%s0 + $0x48] sm:$0xff]
  %v30 = vld [vmem:[%s0 + $0x50] sm:$0xff]
  %v31 = vld [vmem:[%s0 + $0x58] sm:$0xff]
  %v32 = vld [vmem:[%s0 + $0x60] sm:$0xff]
  %v33 = vld [vmem:[%s0 + $0x68] sm:$0xff]
  %v34 = vld [vmem:[%s0 + $0x70] sm:$0xff]
  %v35 = vld [vmem:[%s0 + $0x78] sm:$0xff]
  %v36 = vld [vmem:[%s0 + $0x80] sm:$0xff]
  %v37 = vld [vmem:[%s0 + $0x88] sm:$0xff]
  %v38 = vld [vmem:[%s0 + $0x90] sm:$0x3f]
  %v39 = vld [vmem:[%s1] sm:$0xff]
  %v40 = vld [vmem:[%s1 + $0x8] sm:$0xff]
  %v41 = vld [vmem:[%s2] sm:$0x1]
  %v43 = vlaneseq
  %v44 = vshrl.u32 %v43, 7
  %v45 = vsub.s32 0, %v44
  %v46 = vrot.slane %v41, %v45
  %vm48 = vcmask 130048
  %v50 = vsel %vm48, %v20, 0
  %v53 = vsel %vm48, %v21, 0
  %v56 = vsel %vm48, %v22, 0
  %v59 = vsel %vm48, %v23, 0
  %v62 = vsel %vm48, %v24, 0
  %v65 = vsel %vm48, %v25, 0
  %v68 = vsel %vm48, %v26, 0
  %v71 = vsel %vm48, %v27, 0
  %v74 = vsel %vm48, %v28, 0
  %v77 = vsel %vm48, %v29, 0
  %v80 = vsel %vm48, %v30, 0
  %v83 = vsel %vm48, %v31, 0
  %v86 = vsel %vm48, %v32, 0
  %v89 = vsel %vm48, %v33, 0
  %v92 = vsel %vm48, %v34, 0
  %v95 = vsel %vm48, %v35, 0
  %v98 = vsel %vm48, %v36, 0
  %v101 = vsel %vm48, %v37, 0
  %v104 = vsel %vm48, %v38, 0
  %106 = vmatprep.subr.mxu0 0.0
  %107 = vmatpush1.msra.mxu0 0.0
  %108 = vmatprep.subr.mxu0 0.0
  %109 = vmatpush1.msra.mxu0 0.0
  %110 = vmatprep.subr.mxu0 0.0
  %111 = vmatpush1.msra.mxu0 0.0
  %112 = vmatprep.subr.mxu0 0.0
  %113 = vmatpush1.msra.mxu0 0.0
  %114 = vmatprep.subr.mxu0 0.0
  %115 = vmatpush1.msra.mxu0 0.0
  %116 = vmatprep.subr.mxu0 0.0
  %117 = vmatpush1.msra.mxu0 0.0
  %118 = vmatprep.subr.mxu0 0.0
  %119 = vmatpush1.msra.mxu0 0.0
  %120 = vmatprep.subr.mxu0 0.0
  %121 = vmatpush1.msra.mxu0 0.0
  %122 = vmatprep.subr.mxu0 0.0
  %123 = vmatpush1.msra.mxu0 0.0
  %124 = vmatprep.subr.mxu0 0.0
  %125 = vmatpush1.msra.mxu0 0.0
  %126 = vmatprep.subr.mxu0 0.0
  %127 = vmatpush1.msra.mxu0 0.0
  %128 = vmatprep.subr.mxu0 0.0
  %129 = vmatpush1.msra.mxu0 0.0
  %130 = vmatprep.subr.mxu0 0.0
  %131 = vmatpush1.msra.mxu0 0.0
  %132 = vmatprep.subr.mxu0 0.0
  %133 = vmatpush1.msra.mxu0 0.0
  %134 = vmatprep.subr.mxu0 0.0
  %135 = vmatpush1.msra.mxu0 %v40
  %136 = vmatprep.subr.mxu0 0.0
  %137 = vmatpush1.msra.mxu0 %v39
  %138 = vmatprep.subr.mxu0 0.0
  %139 = vmatpush2.msra.mxu0 0.0
  %140 = vmatprep.subr.mxu0 0.0
  %141 = vmatpush2.msra.mxu0 0.0
  %142 = vmatprep.subr.mxu0 0.0
  %143 = vmatpush2.msra.mxu0 0.0
  %144 = vmatprep.subr.mxu0 0.0
  %145 = vmatpush2.msra.mxu0 0.0
  %146 = vmatprep.subr.mxu0 0.0
  %147 = vmatpush2.msra.mxu0 0.0
  %148 = vmatprep.subr.mxu0 0.0
  %149 = vmatpush2.msra.mxu0 0.0
  %150 = vmatprep.subr.mxu0 0.0
  %151 = vmatpush2.msra.mxu0 0.0
  %152 = vmatprep.subr.mxu0 0.0
  %153 = vmatpush2.msra.mxu0 0.0
  %154 = vmatprep.subr.mxu0 0.0
  %155 = vmatpush2.msra.mxu0 0.0
  %156 = vmatprep.subr.mxu0 0.0
  %157 = vmatpush2.msra.mxu0 0.0
  %158 = vmatprep.subr.mxu0 0.0
  %159 = vmatpush2.msra.mxu0 0.0
  %160 = vmatprep.subr.mxu0 0.0
  %161 = vmatpush2.msra.mxu0 0.0
  %162 = vmatprep.subr.mxu0 0.0
  %163 = vmatpush2.msra.mxu0 0.0
  %164 = vmatprep.subr.mxu0 0.0
  %165 = vmatpush2.msra.mxu0 0.0
  %166 = vmatprep.subr.mxu0 0.0
  %167 = vmatpush2.msra.mxu0 0.0
  %168 = vmatprep.subr.mxu0 0.0
  %169 = vmatpush2.msra.mxu0 0.0
  %170 = vmatprep.mubr.f32.mxu0 0.0
  %171 = vmatmul.mubr.f32.gmra.mxu0 %v50
  %v172 = vpop.f32.mrf.mxu0
  %v173 = vadd.f32 %v46, %v172
  %v174 = vpop.f32.mrf.mxu0
  %175 = vmatprep.mubr.f32.mxu0 0.0
  %176 = vmatmul.mubr.f32.gmra.mxu0 %v53
  %v177 = vpop.f32.mrf.mxu0
  %v178 = vadd.f32 %v46, %v177
  %v179 = vpop.f32.mrf.mxu0
  %180 = vmatprep.mubr.f32.mxu0 0.0
  %181 = vmatmul.mubr.f32.gmra.mxu0 %v56
  %v182 = vpop.f32.mrf.mxu0
  %v183 = vadd.f32 %v46, %v182
  %v184 = vpop.f32.mrf.mxu0
  %185 = vmatprep.mubr.f32.mxu0 0.0
  %186 = vmatmul.mubr.f32.gmra.mxu0 %v59
  %v187 = vpop.f32.mrf.mxu0
  %v188 = vadd.f32 %v46, %v187
  %v189 = vpop.f32.mrf.mxu0
  %190 = vmatprep.mubr.f32.mxu0 0.0
  %191 = vmatmul.mubr.f32.gmra.mxu0 %v62
  %v192 = vpop.f32.mrf.mxu0
  %v193 = vadd.f32 %v46, %v192
  %v194 = vpop.f32.mrf.mxu0
  %195 = vmatprep.mubr.f32.mxu0 0.0
  %196 = vmatmul.mubr.f32.gmra.mxu0 %v65
  %v197 = vpop.f32.mrf.mxu0
  %v198 = vadd.f32 %v46, %v197
  %v199 = vpop.f32.mrf.mxu0
  %200 = vmatprep.mubr.f32.mxu0 0.0
  %201 = vmatmul.mubr.f32.gmra.mxu0 %v68
  %v202 = vpop.f32.mrf.mxu0
  %v203 = vadd.f32 %v46, %v202
  %v204 = vpop.f32.mrf.mxu0
  %205 = vmatprep.mubr.f32.mxu0 0.0
  %206 = vmatmul.mubr.f32.gmra.mxu0 %v71
  %v207 = vpop.f32.mrf.mxu0
  %v208 = vadd.f32 %v46, %v207
  %v209 = vpop.f32.mrf.mxu0
  %210 = vmatprep.mubr.f32.mxu0 0.0
  %211 = vmatmul.mubr.f32.gmra.mxu0 %v74
  %v212 = vpop.f32.mrf.mxu0
  %v213 = vadd.f32 %v46, %v212
  %v214 = vpop.f32.mrf.mxu0
  %215 = vmatprep.mubr.f32.mxu0 0.0
  %216 = vmatmul.mubr.f32.gmra.mxu0 %v77
  %v217 = vpop.f32.mrf.mxu0
  %v218 = vadd.f32 %v46, %v217
  %v219 = vpop.f32.mrf.mxu0
  %220 = vmatprep.mubr.f32.mxu0 0.0
  %221 = vmatmul.mubr.f32.gmra.mxu0 %v80
  %v222 = vpop.f32.mrf.mxu0
  %v223 = vadd.f32 %v46, %v222
  %v224 = vpop.f32.mrf.mxu0
  %225 = vmatprep.mubr.f32.mxu0 0.0
  %226 = vmatmul.mubr.f32.gmra.mxu0 %v83
  %v227 = vpop.f32.mrf.mxu0
  %v228 = vadd.f32 %v46, %v227
  %v229 = vpop.f32.mrf.mxu0
  %230 = vmatprep.mubr.f32.mxu0 0.0
  %231 = vmatmul.mubr.f32.gmra.mxu0 %v86
  %v232 = vpop.f32.mrf.mxu0
  %v233 = vadd.f32 %v46, %v232
  %v234 = vpop.f32.mrf.mxu0
  %235 = vmatprep.mubr.f32.mxu0 0.0
  %236 = vmatmul.mubr.f32.gmra.mxu0 %v89
  %v237 = vpop.f32.mrf.mxu0
  %v238 = vadd.f32 %v46, %v237
  %v239 = vpop.f32.mrf.mxu0
  %240 = vmatprep.mubr.f32.mxu0 0.0
  %241 = vmatmul.mubr.f32.gmra.mxu0 %v92
  %v242 = vpop.f32.mrf.mxu0
  %v243 = vadd.f32 %v46, %v242
  %v244 = vpop.f32.mrf.mxu0
  %245 = vmatprep.mubr.f32.mxu0 0.0
  %246 = vmatmul.mubr.f32.gmra.mxu0 %v95
  %v247 = vpop.f32.mrf.mxu0
  %v248 = vadd.f32 %v46, %v247
  %v249 = vpop.f32.mrf.mxu0
  %250 = vmatprep.mubr.f32.mxu0 0.0
  %251 = vmatmul.mubr.f32.gmra.mxu0 %v98
  %v252 = vpop.f32.mrf.mxu0
  %v253 = vadd.f32 %v46, %v252
  %v254 = vpop.f32.mrf.mxu0
  %255 = vmatprep.mubr.f32.mxu0 0.0
  %256 = vmatmul.mubr.f32.gmra.mxu0 %v101
  %v257 = vpop.f32.mrf.mxu0
  %v258 = vadd.f32 %v46, %v257
  %v259 = vpop.f32.mrf.mxu0
  %260 = vmatprep.mubr.f32.mxu0 0.0
  %261 = vmatmul.mubr.f32.gmra.mxu0 %v104
  %v262 = vpop.f32.mrf.mxu0
  %v263 = vadd.f32 %v46, %v262
  %v264 = vpop.f32.mrf.mxu0
  %265 = vdwg.mxu0
  %vm266 = vcmask 261120
  %v267 = vsel %vm266, %v173, 0.0
  %v268 = vsel %vm266, %v178, 0.0
  %v269 = vadd.f32 %v267, %v268
  %v270 = vsel %vm266, %v183, 0.0
  %v271 = vadd.f32 %v269, %v270
  %v272 = vsel %vm266, %v188, 0.0
  %v273 = vadd.f32 %v271, %v272
  %v274 = vsel %vm266, %v193, 0.0
  %v275 = vadd.f32 %v273, %v274
  %v276 = vsel %vm266, %v198, 0.0
  %v277 = vadd.f32 %v275, %v276
  %v278 = vsel %vm266, %v203, 0.0
  %v279 = vadd.f32 %v277, %v278
  %v280 = vsel %vm266, %v208, 0.0
  %v281 = vadd.f32 %v279, %v280
  %v282 = vsel %vm266, %v213, 0.0
  %v283 = vadd.f32 %v281, %v282
  %v284 = vsel %vm266, %v218, 0.0
  %v285 = vadd.f32 %v283, %v284
  %v286 = vsel %vm266, %v223, 0.0
  %v287 = vadd.f32 %v285, %v286
  %v288 = vsel %vm266, %v228, 0.0
  %v289 = vadd.f32 %v287, %v288
  %v290 = vsel %vm266, %v233, 0.0
  %v291 = vadd.f32 %v289, %v290
  %v292 = vsel %vm266, %v238, 0.0
  %v293 = vadd.f32 %v291, %v292
  %v294 = vsel %vm266, %v243, 0.0
  %v295 = vadd.f32 %v293, %v294
  %v296 = vsel %vm266, %v248, 0.0
  %v297 = vadd.f32 %v295, %v296
  %v298 = vsel %vm266, %v253, 0.0
  %v299 = vadd.f32 %v297, %v298
  %v300 = vsel %vm266, %v258, 0.0
  %v301 = vadd.f32 %v299, %v300
  %vm302 = vcmask 259072
  %v303 = vsel %vm302, %v263, 0.0
  %v304 = vadd.f32 %v301, %v303
  %v305 = vrot.slane %v304, 4
  %v306 = vadd.f32 %v304, %v305
  %v307 = vrot.slane %v306, 2
  %v308 = vadd.f32 %v306, %v307
  %v309 = vrot.slane %v308, 1
  %v310 = vadd.f32 %v308, %v309
  %v311 = vrcp.pop 150.0
  %v312 = vmul.f32 %v310, %v311
  %v313 = vsub.f32 %v173, %v312
  %v314 = vsub.f32 %v178, %v312
  %v315 = vsub.f32 %v183, %v312
  %v316 = vsub.f32 %v188, %v312
  %v317 = vsub.f32 %v193, %v312
  %v318 = vsub.f32 %v198, %v312
  %v319 = vsub.f32 %v203, %v312
  %v320 = vsub.f32 %v208, %v312
  %v321 = vsub.f32 %v213, %v312
  %v322 = vsub.f32 %v218, %v312
  %v323 = vsub.f32 %v223, %v312
  %v324 = vsub.f32 %v228, %v312
  %v325 = vsub.f32 %v233, %v312
  %v326 = vsub.f32 %v238, %v312
  %v327 = vsub.f32 %v243, %v312
  %v328 = vsub.f32 %v248, %v312
  %v329 = vsub.f32 %v253, %v312
  %v330 = vsub.f32 %v258, %v312
  %v331 = vsub.f32 %v263, %v312
  %v332 = vmul.f32 %v313, %v313
  %v333 = vmul.f32 %v314, %v314
  %v334 = vmul.f32 %v315, %v315
  %v335 = vmul.f32 %v316, %v316
  %v336 = vmul.f32 %v317, %v317
  %v337 = vmul.f32 %v318, %v318
  %v338 = vmul.f32 %v319, %v319
  %v339 = vmul.f32 %v320, %v320
  %v340 = vmul.f32 %v321, %v321
  %v341 = vmul.f32 %v322, %v322
  %v342 = vmul.f32 %v323, %v323
  %v343 = vmul.f32 %v324, %v324
  %v344 = vmul.f32 %v325, %v325
  %v345 = vmul.f32 %v326, %v326
  %v346 = vmul.f32 %v327, %v327
  %v347 = vmul.f32 %v328, %v328
  %v348 = vmul.f32 %v329, %v329
  %v349 = vmul.f32 %v330, %v330
  %v350 = vmul.f32 %v331, %v331
  %v351 = vsel %vm266, %v332, 0.0
  %v352 = vsel %vm266, %v333, 0.0
  %v353 = vadd.f32 %v351, %v352
  %v354 = vsel %vm266, %v334, 0.0
  %v355 = vadd.f32 %v353, %v354
  %v356 = vsel %vm266, %v335, 0.0
  %v357 = vadd.f32 %v355, %v356
  %v358 = vsel %vm266, %v336, 0.0
  %v359 = vadd.f32 %v357, %v358
  %v360 = vsel %vm266, %v337, 0.0
  %v361 = vadd.f32 %v359, %v360
  %v362 = vsel %vm266, %v338, 0.0
  %v363 = vadd.f32 %v361, %v362
  %v364 = vsel %vm266, %v339, 0.0
  %v365 = vadd.f32 %v363, %v364
  %v366 = vsel %vm266, %v340, 0.0
  %v367 = vadd.f32 %v365, %v366
  %v368 = vsel %vm266, %v341, 0.0
  %v369 = vadd.f32 %v367, %v368
  %v370 = vsel %vm266, %v342, 0.0
  %v371 = vadd.f32 %v369, %v370
  %v372 = vsel %vm266, %v343, 0.0
  %v373 = vadd.f32 %v371, %v372
  %v374 = vsel %vm266, %v344, 0.0
  %v375 = vadd.f32 %v373, %v374
  %v376 = vsel %vm266, %v345, 0.0
  %v377 = vadd.f32 %v375, %v376
  %v378 = vsel %vm266, %v346, 0.0
  %v379 = vadd.f32 %v377, %v378
  %v380 = vsel %vm266, %v347, 0.0
  %v381 = vadd.f32 %v379, %v380
  %v382 = vsel %vm266, %v348, 0.0
  %v383 = vadd.f32 %v381, %v382
  %v384 = vsel %vm266, %v349, 0.0
  %v385 = vadd.f32 %v383, %v384
  %v386 = vsel %vm302, %v350, 0.0
  %v387 = vadd.f32 %v385, %v386
  %v388 = vrot.slane %v387, 4
  %v389 = vadd.f32 %v387, %v388
  %v390 = vrot.slane %v389, 2
  %v391 = vadd.f32 %v389, %v390
  %v392 = vrot.slane %v391, 1
  %v393 = vadd.f32 %v391, %v392
  %v394 = vmul.f32 %v393, %v311
  %v395 = vld [vmem:[%s3] sm:$0x1]
  %v396 = vadd.f32 %v394, 1e-05
  %v397 = vrsqrt.pop %v396
  %v398 = vmul.f32 %v395, %v397
  %v400 = vlaneseq
  %v401 = vshrl.u32 %v400, 7
  %v402 = vsub.s32 0, %v401
  %v403 = vrot.slane %v398, %v402
  %v405 = vmul.f32 %v313, %v403
  %v406 = vmul.f32 %v314, %v403
  %v407 = vmul.f32 %v315, %v403
  %v408 = vmul.f32 %v316, %v403
  %v409 = vmul.f32 %v317, %v403
  %v410 = vmul.f32 %v318, %v403
  %v411 = vmul.f32 %v319, %v403
  %v412 = vmul.f32 %v320, %v403
  %v413 = vmul.f32 %v321, %v403
  %v414 = vmul.f32 %v322, %v403
  %v415 = vmul.f32 %v323, %v403
  %v416 = vmul.f32 %v324, %v403
  %v417 = vmul.f32 %v325, %v403
  %v418 = vmul.f32 %v326, %v403
  %v419 = vmul.f32 %v327, %v403
  %v420 = vmul.f32 %v328, %v403
  %v421 = vmul.f32 %v329, %v403
  %v422 = vmul.f32 %v330, %v403
  %v423 = vmul.f32 %v331, %v403
  %v424 = vld [vmem:[%s4] sm:$0x1]
  %v426 = vlaneseq
  %v427 = vshrl.u32 %v426, 7
  %v428 = vsub.s32 0, %v427
  %v429 = vrot.slane %v424, %v428
  %v431 = vadd.f32 %v405, %v429
  %v432 = vadd.f32 %v406, %v429
  %v433 = vadd.f32 %v407, %v429
  %v434 = vadd.f32 %v408, %v429
  %v435 = vadd.f32 %v409, %v429
  %v436 = vadd.f32 %v410, %v429
  %v437 = vadd.f32 %v411, %v429
  %v438 = vadd.f32 %v412, %v429
  %v439 = vadd.f32 %v413, %v429
  %v440 = vadd.f32 %v414, %v429
  %v441 = vadd.f32 %v415, %v429
  %v442 = vadd.f32 %v416, %v429
  %v443 = vadd.f32 %v417, %v429
  %v444 = vadd.f32 %v418, %v429
  %v445 = vadd.f32 %v419, %v429
  %v446 = vadd.f32 %v420, %v429
  %v447 = vadd.f32 %v421, %v429
  %v448 = vadd.f32 %v422, %v429
  %v449 = vadd.f32 %v423, %v429
  %vm450 = vcmp.gt.f32.partialorder %v431, 0.0
  %vm451 = vcmp.gt.f32.partialorder %v432, 0.0
  %vm452 = vcmp.gt.f32.partialorder %v433, 0.0
  %vm453 = vcmp.gt.f32.partialorder %v434, 0.0
  %vm454 = vcmp.gt.f32.partialorder %v435, 0.0
  %vm455 = vcmp.gt.f32.partialorder %v436, 0.0
  %vm456 = vcmp.gt.f32.partialorder %v437, 0.0
  %vm457 = vcmp.gt.f32.partialorder %v438, 0.0
  %vm458 = vcmp.gt.f32.partialorder %v439, 0.0
  %vm459 = vcmp.gt.f32.partialorder %v440, 0.0
  %vm460 = vcmp.gt.f32.partialorder %v441, 0.0
  %vm461 = vcmp.gt.f32.partialorder %v442, 0.0
  %vm462 = vcmp.gt.f32.partialorder %v443, 0.0
  %vm463 = vcmp.gt.f32.partialorder %v444, 0.0
  %vm464 = vcmp.gt.f32.partialorder %v445, 0.0
  %vm465 = vcmp.gt.f32.partialorder %v446, 0.0
  %vm466 = vcmp.gt.f32.partialorder %v447, 0.0
  %vm467 = vcmp.gt.f32.partialorder %v448, 0.0
  %vm468 = vcmp.gt.f32.partialorder %v449, 0.0
  %v469 = vmul.f32 %v431, 0.01
  %v470 = vmul.f32 %v432, 0.01
  %v471 = vmul.f32 %v433, 0.01
  %v472 = vmul.f32 %v434, 0.01
  %v473 = vmul.f32 %v435, 0.01
  %v474 = vmul.f32 %v436, 0.01
  %v475 = vmul.f32 %v437, 0.01
  %v476 = vmul.f32 %v438, 0.01
  %v477 = vmul.f32 %v439, 0.01
  %v478 = vmul.f32 %v440, 0.01
  %v479 = vmul.f32 %v441, 0.01
  %v480 = vmul.f32 %v442, 0.01
  %v481 = vmul.f32 %v443, 0.01
  %v482 = vmul.f32 %v444, 0.01
  %v483 = vmul.f32 %v445, 0.01
  %v484 = vmul.f32 %v446, 0.01
  %v485 = vmul.f32 %v447, 0.01
  %v486 = vmul.f32 %v448, 0.01
  %v487 = vmul.f32 %v449, 0.01
  %v488 = vsel %vm450, %v431, %v469
  %v489 = vsel %vm451, %v432, %v470
  %v490 = vsel %vm452, %v433, %v471
  %v491 = vsel %vm453, %v434, %v472
  %v492 = vsel %vm454, %v435, %v473
  %v493 = vsel %vm455, %v436, %v474
  %v494 = vsel %vm456, %v437, %v475
  %v495 = vsel %vm457, %v438, %v476
  %v496 = vsel %vm458, %v439, %v477
  %v497 = vsel %vm459, %v440, %v478
  %v498 = vsel %vm460, %v441, %v479
  %v499 = vsel %vm461, %v442, %v480
  %v500 = vsel %vm462, %v443, %v481
  %v501 = vsel %vm463, %v444, %v482
  %v502 = vsel %vm464, %v445, %v483
  %v503 = vsel %vm465, %v446, %v484
  %v504 = vsel %vm466, %v447, %v485
  %v505 = vsel %vm467, %v448, %v486
  %v506 = vsel %vm468, %v449, %v487
  %507 = vst.msk [vmem:[%s5] sm:$0xff] %vm266, %v488
  %508 = vst.msk [vmem:[%s5 + $0x8] sm:$0xff] %vm266, %v489
  %509 = vst.msk [vmem:[%s5 + $0x10] sm:$0xff] %vm266, %v490
  %510 = vst.msk [vmem:[%s5 + $0x18] sm:$0xff] %vm266, %v491
  %511 = vst.msk [vmem:[%s5 + $0x20] sm:$0xff] %vm266, %v492
  %512 = vst.msk [vmem:[%s5 + $0x28] sm:$0xff] %vm266, %v493
  %513 = vst.msk [vmem:[%s5 + $0x30] sm:$0xff] %vm266, %v494
  %514 = vst.msk [vmem:[%s5 + $0x38] sm:$0xff] %vm266, %v495
  %515 = vst.msk [vmem:[%s5 + $0x40] sm:$0xff] %vm266, %v496
  %516 = vst.msk [vmem:[%s5 + $0x48] sm:$0xff] %vm266, %v497
  %517 = vst.msk [vmem:[%s5 + $0x50] sm:$0xff] %vm266, %v498
  %518 = vst.msk [vmem:[%s5 + $0x58] sm:$0xff] %vm266, %v499
  %519 = vst.msk [vmem:[%s5 + $0x60] sm:$0xff] %vm266, %v500
  %520 = vst.msk [vmem:[%s5 + $0x68] sm:$0xff] %vm266, %v501
  %521 = vst.msk [vmem:[%s5 + $0x70] sm:$0xff] %vm266, %v502
  %522 = vst.msk [vmem:[%s5 + $0x78] sm:$0xff] %vm266, %v503
  %523 = vst.msk [vmem:[%s5 + $0x80] sm:$0xff] %vm266, %v504
  %524 = vst.msk [vmem:[%s5 + $0x88] sm:$0xff] %vm266, %v505
  %525 = vst.msk [vmem:[%s5 + $0x90] sm:$0x3f] %vm302, %v506
  // Predicated region
  $region22: #{tpu_custom_call.1} parent=0 // pred_check
    _
  $region23: #{tpu_custom_call.1} parent=0 // pred_check_branch
    %527 = sbr.rel (0) target = $region25
  $region24: #{tpu_custom_call.1} parent=0 // pred_region
    _
  $region25: #{tpu_custom_call.1} parent=0 // pred_fallthru
    _
  // Predicated region
  $region26: #{tpu_custom_call.1} parent=0 // pred_check
    _
  $region27: #{tpu_custom_call.1} parent=0 // pred_check_branch
    %529 = sbr.rel (0) target = $region29
  $region28: #{tpu_custom_call.1} parent=0 // pred_region
    _
  $region29: #{tpu_custom_call.1} parent=0 // pred_fallthru
    _

</llo_original>
